<compile_context>
chip_gen: v7x
topology: tpu7x:2x2x1
jax: 0.10.0
libtpu: 0.0.40
codegen_flags: <defaults>
</compile_context>

<pallas_src>
import jax
import jax.numpy as jnp
from jax.experimental import pallas as pl
from jax.experimental.pallas import tpu as pltpu


def _round_up(x, m):
    return ((x + m - 1) // m) * m


def _vmem_policy():
    """Generation-aware (working-set budget, scoped limit, grid-step floor)."""
    try:
        cap = int(pltpu.get_tpu_info().vmem_capacity_bytes)
    except Exception:
        cap = 64 * 1024 * 1024                       # conservative (v7x-sized)
    if cap >= 128 * 1024 * 1024:                     # v5e / v6e: 128 MiB VMEM
        return 56 * 1024 * 1024, 64 * 1024 * 1024, 2
    # v7x class: 64 MiB per TensorCore -> smaller blocks, >=2 steps per core.
    return 40 * 1024 * 1024, 48 * 1024 * 1024, 4


# ---------------------------------------------------------------------------
# Kernels
# ---------------------------------------------------------------------------
def _make_flat_crop_kernel(H, W, out_h, out_w):
    def kernel(x_ref, o_ref):
        # x_ref: (b, H*W)   o_ref: (b, out_h*out_w)   -- all slices static.
        for i in range(out_h):
            src = (i + 1) * W + 1
            dst = i * out_w
            o_ref[:, dst:dst + out_w] = x_ref[:, src:src + out_w]
    return kernel


def _plane_crop_kernel(x_ref, o_ref):
    # x_ref: (b, H, W)   o_ref: (b, H-2, W-2)
    H, W = x_ref.shape[1], x_ref.shape[2]
    o_ref[...] = x_ref[:, 1:H - 1, 1:W - 1]


# ---------------------------------------------------------------------------
# Wrappers
# ---------------------------------------------------------------------------
def _crop_flat(x, N, C, H, W, out_h, out_w, budget, vmem_limit, min_steps, s,
               itemsize):
    NC = N * C
    HW, OHW = H * W, out_h * out_w
    # Padded VMEM footprint of ONE plane in a (b, HW) in-block + (b, OHW)
    # out-block (one sublane row per plane, lanes padded to 128).
    plane_bytes = (_round_up(HW, 128) + _round_up(OHW, 128)) * itemsize
    b = max(1, int(budget // (2 * plane_bytes)))      # 2x: double buffering
    b = min(b, NC, max(1, pl.cdiv(NC, min_steps)))
    if b < NC:
        b = min(NC, _round_up(b, s))                  # sublane-aligned block rows
    grid = (pl.cdiv(NC, b),)

    out = pl.pallas_call(
        _make_flat_crop_kernel(H, W, out_h, out_w),
        out_shape=jax.ShapeDtypeStruct((NC, OHW), x.dtype),
        grid_spec=pltpu.PrefetchScalarGridSpec(
            num_scalar_prefetch=0,
            grid=grid,
            in_specs=[pl.BlockSpec((b, HW), lambda i: (i, 0))],
            out_specs=pl.BlockSpec((b, OHW), lambda i: (i, 0)),
        ),
        compiler_params=pltpu.CompilerParams(
            dimension_semantics=("parallel",),
            vmem_limit_bytes=vmem_limit,
        ),
    )(x.reshape(NC, HW))
    return out.reshape(N, C, out_h, out_w)


def _crop_planes(x, N, C, H, W, out_h, out_w, budget, vmem_limit, min_steps, s,
                 itemsize):
    NC = N * C
    # Padded VMEM footprint of ONE (H, W) + (out_h, out_w) plane pair.
    plane_bytes = (_round_up(H, s) * _round_up(W, 128)
                   + _round_up(out_h, s) * _round_up(out_w, 128)) * itemsize
    b = max(1, int(budget // (2 * plane_bytes)))      # 2x: double buffering
    b = min(b, NC, max(1, pl.cdiv(NC, min_steps)))
    grid = (pl.cdiv(NC, b),)

    out = pl.pallas_call(
        _plane_crop_kernel,
        out_shape=jax.ShapeDtypeStruct((NC, out_h, out_w), x.dtype),
        grid_spec=pltpu.PrefetchScalarGridSpec(
            num_scalar_prefetch=0,
            grid=grid,
            in_specs=[
                # Last two block dims equal the full array extents -> (8,128) OK.
                pl.BlockSpec((b, H, W), lambda i: (i, 0, 0)),
            ],
            out_specs=pl.BlockSpec((b, out_h, out_w), lambda i: (i, 0, 0)),
        ),
        compiler_params=pltpu.CompilerParams(
            dimension_semantics=("parallel",),
            vmem_limit_bytes=vmem_limit,
        ),
    )(x.reshape(NC, H, W))
    return out.reshape(N, C, out_h, out_w)


def slice_interior(x):
    """Equivalent of x[:, :, 1:-1, 1:-1] for an NCHW tensor."""
    N, C, H, W = x.shape
    out_h, out_w = H - 2, W - 2

    # PyTorch's 1:-1 on a dim of size <= 2 yields an empty tensor
    # (Mosaic rejects zero-sized blocks, so handle it in the wrapper).
    if out_h <= 0 or out_w <= 0:
        return jnp.zeros((N, C, max(out_h, 0), max(out_w, 0)), x.dtype)

    itemsize = jnp.dtype(x.dtype).itemsize
    s = 32 // itemsize                 # sublane pack: 8 (4B) / 16 (2B) / 32 (1B)
    budget, vmem_limit, min_steps = _vmem_policy()

    # Lane-dense flattened path for small / lane-misaligned widths.  Gated on
    # out_h so the statically unrolled per-row copy stays small.
    if out_w < 128 and out_h <= 128:
        try:
            return _crop_flat(x, N, C, H, W, out_h, out_w,
                              budget, vmem_limit, min_steps, s, itemsize)
        except Exception:
            # Fall back to the always-lowerable whole-plane path (eager mode:
            # Mosaic lowering errors surface at call time and are caught here).
            pass
    return _crop_planes(x, N, C, H, W, out_h, out_w,
                        budget, vmem_limit, min_steps, s, itemsize)


if __name__ == "__main__":
    key = jax.random.PRNGKey(0)

    # Primary test (matches the module's expected NCHW usage): flat path.
    x = jax.random.normal(key, (2, 4, 16, 16), dtype=jnp.float32)
    out = jax.block_until_ready(slice_interior(x))
    ref = x[:, :, 1:-1, 1:-1]
    assert out.shape == (2, 4, 14, 14), out.shape
    assert out.dtype == x.dtype
    assert jnp.array_equal(out, ref), "mismatch vs reference slice (flat path)"

    # Secondary test with out_w >= 128: exercises the whole-plane 3-D path.
    x2 = jax.random.normal(jax.random.PRNGKey(0), (1, 2, 10, 132),
                           dtype=jnp.float32)
    out2 = jax.block_until_ready(slice_interior(x2))
    ref2 = x2[:, :, 1:-1, 1:-1]
    assert out2.shape == (1, 2, 8, 130), out2.shape
    assert jnp.array_equal(out2, ref2), "mismatch vs reference slice (plane path)"

    print("KERNEL_OK")
</pallas_src>

<mosaic_0001>
module attributes {stable_mosaic.version = 11 : i64} {
  func.func @kernel(%arg0: i32, %arg1: memref<8x256xf32, #tpu.memory_space<vmem>>, %arg2: memref<8x196xf32, #tpu.memory_space<vmem>>) attributes {dimension_semantics = [#tpu.dimension_semantics<parallel>], iteration_bounds = array<i64: 1>, scalar_prefetch = 0 : i64, scratch_operands = 0 : i64, tpu.core_type = #tpu.core_type<tc>, window_params = [{transform_indices = @transform_0, window_bounds = array<i64: 8, 256>}, {transform_indices = @transform_1, window_bounds = array<i64: 8, 196>}]} {
    %c0 = arith.constant 0 : index
    %c17 = arith.constant 17 : index
    %0 = vector.load %arg1[%c0, %c17] : memref<8x256xf32, #tpu.memory_space<vmem>>, vector<8x14xf32>
    %c0_0 = arith.constant 0 : index
    %c0_1 = arith.constant 0 : index
    %1 = vector.load %arg2[%c0_0, %c0_1] : memref<8x196xf32, #tpu.memory_space<vmem>>, vector<8x14xf32>
    tpu.vector_store %arg2[%c0_0, %c0_1], %0 {strides = array<i32>} : memref<8x196xf32, #tpu.memory_space<vmem>>, vector<8x14xf32>,
    %c0_2 = arith.constant 0 : index
    %c33 = arith.constant 33 : index
    %2 = vector.load %arg1[%c0_2, %c33] : memref<8x256xf32, #tpu.memory_space<vmem>>, vector<8x14xf32>
    %c0_3 = arith.constant 0 : index
    %c14 = arith.constant 14 : index
    %3 = vector.load %arg2[%c0_3, %c14] : memref<8x196xf32, #tpu.memory_space<vmem>>, vector<8x14xf32>
    tpu.vector_store %arg2[%c0_3, %c14], %2 {strides = array<i32>} : memref<8x196xf32, #tpu.memory_space<vmem>>, vector<8x14xf32>,
    %c0_4 = arith.constant 0 : index
    %c49 = arith.constant 49 : index
    %4 = vector.load %arg1[%c0_4, %c49] : memref<8x256xf32, #tpu.memory_space<vmem>>, vector<8x14xf32>
    %c0_5 = arith.constant 0 : index
    %c28 = arith.constant 28 : index
    %5 = vector.load %arg2[%c0_5, %c28] : memref<8x196xf32, #tpu.memory_space<vmem>>, vector<8x14xf32>
    tpu.vector_store %arg2[%c0_5, %c28], %4 {strides = array<i32>} : memref<8x196xf32, #tpu.memory_space<vmem>>, vector<8x14xf32>,
    %c0_6 = arith.constant 0 : index
    %c65 = arith.constant 65 : index
    %6 = vector.load %arg1[%c0_6, %c65] : memref<8x256xf32, #tpu.memory_space<vmem>>, vector<8x14xf32>
    %c0_7 = arith.constant 0 : index
    %c42 = arith.constant 42 : index
    %7 = vector.load %arg2[%c0_7, %c42] : memref<8x196xf32, #tpu.memory_space<vmem>>, vector<8x14xf32>
    tpu.vector_store %arg2[%c0_7, %c42], %6 {strides = array<i32>} : memref<8x196xf32, #tpu.memory_space<vmem>>, vector<8x14xf32>,
    %c0_8 = arith.constant 0 : index
    %c81 = arith.constant 81 : index
    %8 = vector.load %arg1[%c0_8, %c81] : memref<8x256xf32, #tpu.memory_space<vmem>>, vector<8x14xf32>
    %c0_9 = arith.constant 0 : index
    %c56 = arith.constant 56 : index
    %9 = vector.load %arg2[%c0_9, %c56] : memref<8x196xf32, #tpu.memory_space<vmem>>, vector<8x14xf32>
    tpu.vector_store %arg2[%c0_9, %c56], %8 {strides = array<i32>} : memref<8x196xf32, #tpu.memory_space<vmem>>, vector<8x14xf32>,
    %c0_10 = arith.constant 0 : index
    %c97 = arith.constant 97 : index
    %10 = vector.load %arg1[%c0_10, %c97] : memref<8x256xf32, #tpu.memory_space<vmem>>, vector<8x14xf32>
    %c0_11 = arith.constant 0 : index
    %c70 = arith.constant 70 : index
    %11 = vector.load %arg2[%c0_11, %c70] : memref<8x196xf32, #tpu.memory_space<vmem>>, vector<8x14xf32>
    tpu.vector_store %arg2[%c0_11, %c70], %10 {strides = array<i32>} : memref<8x196xf32, #tpu.memory_space<vmem>>, vector<8x14xf32>,
    %c0_12 = arith.constant 0 : index
    %c113 = arith.constant 113 : index
    %12 = vector.load %arg1[%c0_12, %c113] : memref<8x256xf32, #tpu.memory_space<vmem>>, vector<8x14xf32>
    %c0_13 = arith.constant 0 : index
    %c84 = arith.constant 84 : index
    %13 = vector.load %arg2[%c0_13, %c84] : memref<8x196xf32, #tpu.memory_space<vmem>>, vector<8x14xf32>
    tpu.vector_store %arg2[%c0_13, %c84], %12 {strides = array<i32>} : memref<8x196xf32, #tpu.memory_space<vmem>>, vector<8x14xf32>,
    %c0_14 = arith.constant 0 : index
    %c129 = arith.constant 129 : index
    %14 = vector.load %arg1[%c0_14, %c129] : memref<8x256xf32, #tpu.memory_space<vmem>>, vector<8x14xf32>
    %c0_15 = arith.constant 0 : index
    %c98 = arith.constant 98 : index
    %15 = vector.load %arg2[%c0_15, %c98] : memref<8x196xf32, #tpu.memory_space<vmem>>, vector<8x14xf32>
    tpu.vector_store %arg2[%c0_15, %c98], %14 {strides = array<i32>} : memref<8x196xf32, #tpu.memory_space<vmem>>, vector<8x14xf32>,
    %c0_16 = arith.constant 0 : index
    %c145 = arith.constant 145 : index
    %16 = vector.load %arg1[%c0_16, %c145] : memref<8x256xf32, #tpu.memory_space<vmem>>, vector<8x14xf32>
    %c0_17 = arith.constant 0 : index
    %c112 = arith.constant 112 : index
    %17 = vector.load %arg2[%c0_17, %c112] : memref<8x196xf32, #tpu.memory_space<vmem>>, vector<8x14xf32>
    tpu.vector_store %arg2[%c0_17, %c112], %16 {strides = array<i32>} : memref<8x196xf32, #tpu.memory_space<vmem>>, vector<8x14xf32>,
    %c0_18 = arith.constant 0 : index
    %c161 = arith.constant 161 : index
    %18 = vector.load %arg1[%c0_18, %c161] : memref<8x256xf32, #tpu.memory_space<vmem>>, vector<8x14xf32>
    %c0_19 = arith.constant 0 : index
    %c126 = arith.constant 126 : index
    %19 = vector.load %arg2[%c0_19, %c126] : memref<8x196xf32, #tpu.memory_space<vmem>>, vector<8x14xf32>
    tpu.vector_store %arg2[%c0_19, %c126], %18 {strides = array<i32>} : memref<8x196xf32, #tpu.memory_space<vmem>>, vector<8x14xf32>,
    %c0_20 = arith.constant 0 : index
    %c177 = arith.constant 177 : index
    %20 = vector.load %arg1[%c0_20, %c177] : memref<8x256xf32, #tpu.memory_space<vmem>>, vector<8x14xf32>
    %c0_21 = arith.constant 0 : index
    %c140 = arith.constant 140 : index
    %21 = vector.load %arg2[%c0_21, %c140] : memref<8x196xf32, #tpu.memory_space<vmem>>, vector<8x14xf32>
    tpu.vector_store %arg2[%c0_21, %c140], %20 {strides = array<i32>} : memref<8x196xf32, #tpu.memory_space<vmem>>, vector<8x14xf32>,
    %c0_22 = arith.constant 0 : index
    %c193 = arith.constant 193 : index
    %22 = vector.load %arg1[%c0_22, %c193] : memref<8x256xf32, #tpu.memory_space<vmem>>, vector<8x14xf32>
    %c0_23 = arith.constant 0 : index
    %c154 = arith.constant 154 : index
    %23 = vector.load %arg2[%c0_23, %c154] : memref<8x196xf32, #tpu.memory_space<vmem>>, vector<8x14xf32>
    tpu.vector_store %arg2[%c0_23, %c154], %22 {strides = array<i32>} : memref<8x196xf32, #tpu.memory_space<vmem>>, vector<8x14xf32>,
    %c0_24 = arith.constant 0 : index
    %c209 = arith.constant 209 : index
    %24 = vector.load %arg1[%c0_24, %c209] : memref<8x256xf32, #tpu.memory_space<vmem>>, vector<8x14xf32>
    %c0_25 = arith.constant 0 : index
    %c168 = arith.constant 168 : index
    %25 = vector.load %arg2[%c0_25, %c168] : memref<8x196xf32, #tpu.memory_space<vmem>>, vector<8x14xf32>
    tpu.vector_store %arg2[%c0_25, %c168], %24 {strides = array<i32>} : memref<8x196xf32, #tpu.memory_space<vmem>>, vector<8x14xf32>,
    %c0_26 = arith.constant 0 : index
    %c225 = arith.constant 225 : index
    %26 = vector.load %arg1[%c0_26, %c225] : memref<8x256xf32, #tpu.memory_space<vmem>>, vector<8x14xf32>
    %c0_27 = arith.constant 0 : index
    %c182 = arith.constant 182 : index
    %27 = vector.load %arg2[%c0_27, %c182] : memref<8x196xf32, #tpu.memory_space<vmem>>, vector<8x14xf32>
    tpu.vector_store %arg2[%c0_27, %c182], %26 {strides = array<i32>} : memref<8x196xf32, #tpu.memory_space<vmem>>, vector<8x14xf32>,
    return
  }
  func.func @transform_0(%arg0: i32) -> (i32, i32) {
    %c0_i32 = arith.constant 0 : i32
    %c0_i32_0 = arith.constant 0 : i32
    return %arg0, %c0_i32 : i32, i32
  }
  func.func @transform_1(%arg0: i32) -> (i32, i32) {
    %c0_i32 = arith.constant 0 : i32
    %c0_i32_0 = arith.constant 0 : i32
    return %arg0, %c0_i32 : i32, i32
  }
}

module attributes {stable_mosaic.version = 11 : i64} {
  func.func @_plane_crop_kernel(%arg0: i32, %arg1: memref<2x16x16xf32, #tpu.memory_space<vmem>>, %arg2: memref<2x14x14xf32, #tpu.memory_space<vmem>>) attributes {dimension_semantics = [#tpu.dimension_semantics<parallel>], iteration_bounds = array<i64: 4>, scalar_prefetch = 0 : i64, scratch_operands = 0 : i64, tpu.core_type = #tpu.core_type<tc>, window_params = [{transform_indices = @transform_0, window_bounds = array<i64: 2, 16, 16>}, {transform_indices = @transform_1, window_bounds = array<i64: 2, 14, 14>}]} {
    %c0 = arith.constant 0 : index
    %c1 = arith.constant 1 : index
    %c1_0 = arith.constant 1 : index
    %0 = vector.load %arg1[%c0, %c1, %c1_0] : memref<2x16x16xf32, #tpu.memory_space<vmem>>, vector<2x14x14xf32>
    %c0_1 = arith.constant 0 : index
    %c0_2 = arith.constant 0 : index
    %c0_3 = arith.constant 0 : index
    %1 = vector.load %arg2[%c0_1, %c0_2, %c0_3] : memref<2x14x14xf32, #tpu.memory_space<vmem>>, vector<2x14x14xf32>
    tpu.vector_store %arg2[%c0_1, %c0_2, %c0_3], %0 {strides = array<i32>} : memref<2x14x14xf32, #tpu.memory_space<vmem>>, vector<2x14x14xf32>,
    return
  }
  func.func @transform_0(%arg0: i32) -> (i32, i32, i32) {
    %c0_i32 = arith.constant 0 : i32
    %c0_i32_0 = arith.constant 0 : i32
    %c0_i32_1 = arith.constant 0 : i32
    return %arg0, %c0_i32, %c0_i32_0 : i32, i32, i32
  }
  func.func @transform_1(%arg0: i32) -> (i32, i32, i32) {
    %c0_i32 = arith.constant 0 : i32
    %c0_i32_0 = arith.constant 0 : i32
    %c0_i32_1 = arith.constant 0 : i32
    return %arg0, %c0_i32, %c0_i32_0 : i32, i32, i32
  }
}

</mosaic_0001>

<llo_original>
// kernel: tpu_custom_call.1
$region0: #{tpu_custom_call.1}
  #allocation0 [shape = 'u32[]', space=smem, size = 0x4, offset = 0x4, fixed_abs, tag = 'smem constant byte address 0x4 - core index']
  #allocation1 [shape = 'u32[144,128]{1,0:T(1,128)}', space=vmem, size = 0x12000, scoped, tag = 'internal scratch']
  %s0 = inlined_call_operand.hbm [shape: f32[8,256], index: 0, kind: input, shape index: {}]
  %s1 = inlined_call_operand.hbm [shape: f32[8,196], index: 1, kind: output, shape index: {}]
  %s2 = sld [smem:[#allocation0]]
  $region18: #{tpu_custom_call.1} parent=0
    _
  %s4 = ssub.s32 1, %s2
  %s5 = scalar_select 0, %s4, %s2
  $region1: #{tpu_custom_call.1} parent=0
    #allocation2 [shape = 'u8[8192]{0}', space=vmem, size = 0x2000, scoped, tag = 'input window, operand 0, single buffered']
    #allocation3 [shape = 's32[1]{0}', space=sflag, size = 0x4, scoped, tag = 'scoped memory for tpu_custom_call.1']
    #allocation4 [shape = 's32[1]{0}', space=sflag, size = 0x4, scoped, tag = 'scoped memory for tpu_custom_call.1']
    #allocation5 [shape = 'u8[8192]{0}', space=vmem, size = 0x2000, scoped, tag = 'output window, operand 0, single buffered']
    %6 = vsyncpa [#allocation3], 0
    %7 = vsyncpa [#allocation4], 0
    // Predicated region
    $region2: #{tpu_custom_call.1} parent=1 // pred_check
      _
    $region3: #{tpu_custom_call.1} parent=1 // pred_check_branch
      %9 = sbr.rel (0) target = $region5
    $region4: #{tpu_custom_call.1} parent=1 // pred_region
      %s11 = ssub.s32 256, 256
      %12 = vsyncadd [#allocation3], %s11
      %s14 = sshll.u32 [#allocation2], 4
      %s15 = int_to_ptr.vmem [resolvable:$true] %s14
      %17 = dma.hbm_to_vmem [thread:$0]  %s0, 256, %s15, [#allocation3]
    $region5: #{tpu_custom_call.1} parent=1 // pred_fallthru
      _
    // Predicated region
    $region6: #{tpu_custom_call.1} parent=1 // pred_check
      _
    $region7: #{tpu_custom_call.1} parent=1 // pred_check_branch
      %19 = sbr.rel (0) target = $region9
    $region8: #{tpu_custom_call.1} parent=1 // pred_region
      %20 = dma.done [#allocation3], 256
    $region9: #{tpu_custom_call.1} parent=1 // pred_fallthru
      _
    %v21 = vld [vmem:[#allocation2] sm:$0xff]
    %23 = vrot.lane.b32.xlu0 %v21, 111
    %v24 = vpop.permute.xlu0 %23
    %vm26 = vcmask 113664
    %27 = vst.msk [vmem:[#allocation5] sm:$0xff] %vm26, %v24
    %v28 = vld [vmem:[#allocation2] sm:$0xff]
    %30 = vrot.lane.b32.xlu0 %v28, 109
    %v31 = vpop.permute.xlu0 %30
    %vm33 = vcmask 228464
    %34 = vst.msk [vmem:[#allocation5] sm:$0xff] %vm33, %v31
    %v35 = vld [vmem:[#allocation2] sm:$0xff]
    %37 = vrot.lane.b32.xlu0 %v35, 107
    %v38 = vpop.permute.xlu0 %37
    %vm40 = vcmask 343264
    %41 = vst.msk [vmem:[#allocation5] sm:$0xff] %vm40, %v38
    %v42 = vld [vmem:[#allocation2] sm:$0xff]
    %44 = vrot.lane.b32.xlu0 %v42, 105
    %v45 = vpop.permute.xlu0 %44
    %vm47 = vcmask 458064
    %48 = vst.msk [vmem:[#allocation5] sm:$0xff] %vm47, %v45
    %v49 = vld [vmem:[#allocation2] sm:$0xff]
    %51 = vrot.lane.b32.xlu0 %v49, 103
    %v52 = vpop.permute.xlu0 %51
    %vm54 = vcmask 572864
    %55 = vst.msk [vmem:[#allocation5] sm:$0xff] %vm54, %v52
    %v56 = vld [vmem:[#allocation2] sm:$0xff]
    %58 = vrot.lane.b32.xlu0 %v56, 101
    %v59 = vpop.permute.xlu0 %58
    %vm61 = vcmask 687664
    %62 = vst.msk [vmem:[#allocation5] sm:$0xff] %vm61, %v59
    %v63 = vld [vmem:[#allocation2] sm:$0xff]
    %65 = vrot.lane.b32.xlu0 %v63, 99
    %v66 = vpop.permute.xlu0 %65
    %vm68 = vcmask 802464
    %69 = vst.msk [vmem:[#allocation5] sm:$0xff] %vm68, %v66
    %v70 = vld [vmem:[#allocation2 + $0x8] sm:$0xff]
    %72 = vrot.lane.b32.xlu0 %v70, 97
    %v73 = vpop.permute.xlu0 %72
    %vm75 = vcmask 917264
    %76 = vst.msk [vmem:[#allocation5] sm:$0xff] %vm75, %v73
    %v77 = vld [vmem:[#allocation2 + $0x8] sm:$0xff]
    %79 = vrot.lane.b32.xlu0 %v77, 95
    %v80 = vpop.permute.xlu0 %79
    %vm82 = vcmask 1032064
    %83 = vst.msk [vmem:[#allocation5] sm:$0xff] %vm82, %v80
    %v84 = vld [vmem:[#allocation2 + $0x8] sm:$0xff]
    %86 = vrot.lane.b32.xlu0 %v84, 93
    %v87 = vpop.permute.xlu0 %86
    %vm89 = vcmask 1048560
    %90 = vst.msk [vmem:[#allocation5] sm:$0xff] %vm89, %v87
    %vm91 = vcmask 97280
    %92 = vst.msk [vmem:[#allocation5 + $0x8] sm:$0xff] %vm91, %v87
    %v93 = vld [vmem:[#allocation2 + $0x8] sm:$0xff]
    %95 = vrot.lane.b32.xlu0 %v93, 91
    %v96 = vpop.permute.xlu0 %95
    %vm98 = vcmask 212064
    %99 = vst.msk [vmem:[#allocation5 + $0x8] sm:$0xff] %vm98, %v96
    %v100 = vld [vmem:[#allocation2 + $0x8] sm:$0xff]
    %102 = vrot.lane.b32.xlu0 %v100, 89
    %v103 = vpop.permute.xlu0 %102
    %vm105 = vcmask 326864
    %106 = vst.msk [vmem:[#allocation5 + $0x8] sm:$0xff] %vm105, %v103
    %v107 = vld [vmem:[#allocation2 + $0x8] sm:$0xff]
    %109 = vrot.lane.b32.xlu0 %v107, 87
    %v110 = vpop.permute.xlu0 %109
    %vm112 = vcmask 441664
    %113 = vst.msk [vmem:[#allocation5 + $0x8] sm:$0xff] %vm112, %v110
    %v114 = vld [vmem:[#allocation2 + $0x8] sm:$0xff]
    %116 = vrot.lane.b32.xlu0 %v114, 85
    %v117 = vpop.permute.xlu0 %116
    %vm119 = vcmask 556464
    %120 = vst.msk [vmem:[#allocation5 + $0x8] sm:$0xff] %vm119, %v117
    // Predicated region
    $region10: #{tpu_custom_call.1} parent=1 // pred_check
      _
    $region11: #{tpu_custom_call.1} parent=1 // pred_check_branch
      %122 = sbr.rel (0) target = $region13
    $region12: #{tpu_custom_call.1} parent=1 // pred_region
      %s124 = ssub.s32 256, 256
      %125 = vsyncadd [#allocation4], %s124
      %s127 = sshll.u32 [#allocation5], 4
      %s128 = int_to_ptr.vmem [resolvable:$true] %s127
      %130 = dma.vmem_to_hbm [thread:$0]  %s128, 256, %s1, [#allocation4]
    $region13: #{tpu_custom_call.1} parent=1 // pred_fallthru
      _
    // Predicated region
    $region14: #{tpu_custom_call.1} parent=1 // pred_check
      _
    $region15: #{tpu_custom_call.1} parent=1 // pred_check_branch
      %132 = sbr.rel (0) target = $region17
    $region16: #{tpu_custom_call.1} parent=1 // pred_region
      %133 = dma.done [#allocation4], 256
    $region17: #{tpu_custom_call.1} parent=1 // pred_fallthru
      _
    %134 = vsyncpa [#allocation3], 1
    %135 = vsyncpa [#allocation4], 1

// kernel: tpu_custom_call.1
$region0: #{tpu_custom_call.1}
  #allocation0 [shape = 'u32[]', space=smem, size = 0x4, offset = 0x4, fixed_abs, tag = 'smem constant byte address 0x4 - core index']
  #allocation1 [shape = 'u32[144,128]{1,0:T(1,128)}', space=vmem, size = 0x12000, scoped, tag = 'internal scratch']
  %s0 = inlined_call_operand.hbm [shape: f32[8,16,16], index: 0, kind: input, shape index: {}]
  %s1 = inlined_call_operand.vmem [shape: f32[8,14,14], index: 1, kind: output, shape index: {}]
  %s2 = sld [smem:[#allocation0]]
  $region41: #{tpu_custom_call.1} parent=0
    _
  %s4 = ssub.s32 1, %s2
  %s5 = scalar_select 0, %s4, %s2
  $region1: #{tpu_custom_call.1} parent=0
    #allocation2 [shape = 'u8[32768]{0}', space=vmem, size = 0x8000, scoped, tag = 'input window, operand 0']
    #allocation3 [shape = 's32[2]{0}', space=sflag, size = 0x8, scoped, tag = 'scoped memory for tpu_custom_call.1']
    %6 = vsyncpa [#allocation3], 0
    %s7 = scalar_lea.sflag [#allocation3], 1
    %8 = vsyncpa %s7, 0
    loop: start=0, step=1, limit=6
    $region2: #{tpu_custom_call.1} parent=1 // loop_pre_header
      _
    $region3: #{tpu_custom_call.1} parent=1 // loop_header
      %s10 = sphi 0, %s14
      %p11 = scmp.ge.s32.totalorder %s10, 6
      %s20 = sphi 0, %s22
      %s23 = sphi 0, %s20
      %s24 = sphi 0, %s23
      %s40 = sphi 0, %s24
      %s46 = sphi 0, %s48
      %s49 = sphi 0, %s46
      %s50 = sphi 0, %s49
      %s66 = sphi 0, %s50
    $region4: #{tpu_custom_call.1} parent=1 // loop_header_branch
      %13 = sbr.rel (%p11) target = $region8
    $region5: #{tpu_custom_call.1} parent=1 // loop_body
      %s15 = ssub.s32 %s10, 1
      %s16 = ssub.s32 %s10, 2
      %s17 = sadd.s32 %s10, 1
      %s18 = ssub.s32 %s10, %s17
      %p19 = scmp.eq.s32.totalorder %s18, 0
      %s21 = sadd.s32 %s20, 1
      %s22 = scalar_select %p19, %s20, %s21
      %p25 = pneg %p19
      %p26 = scmp.eq.s32.totalorder %s10, 3
      %p27 = por %p25, %p26
      %p28 = scmp.ne.s32.totalorder %s20, %s23
      %p29 = scmp.eq.s32.totalorder %s10, 0
      %p30 = por %p28, %p29
      %p31 = scmp.ne.s32.totalorder %s20, %s23
      %p32 = scmp.eq.s32.totalorder %s15, 3
      %p33 = por %p31, %p32
      %p34 = scmp.ne.s32.totalorder %s23, %s24
      %p35 = scmp.eq.s32.totalorder %s15, 0
      %p36 = por %p34, %p35
      %p37 = scmp.ne.s32.totalorder %s23, %s24
      %p38 = scmp.eq.s32.totalorder %s16, 3
      %p39 = por %p37, %p38
      %p41 = scmp.ne.s32.totalorder %s24, %s40
      %p42 = scmp.eq.s32.totalorder %s16, 0
      %p43 = por %p41, %p42
      %s44 = ssub.s32 %s10, %s17
      %p45 = scmp.eq.s32.totalorder %s44, 0
      %s47 = sadd.s32 %s46, 1
      %s48 = scalar_select %p45, %s46, %s47
      %p51 = pneg %p45
      %p52 = scmp.eq.s32.totalorder %s10, 3
      %p53 = por %p51, %p52
      %p54 = scmp.ne.s32.totalorder %s46, %s49
      %p55 = scmp.eq.s32.totalorder %s10, 0
      %p56 = por %p54, %p55
      %p57 = scmp.ne.s32.totalorder %s46, %s49
      %p58 = scmp.eq.s32.totalorder %s15, 3
      %p59 = por %p57, %p58
      %p60 = scmp.ne.s32.totalorder %s49, %s50
      %p61 = scmp.eq.s32.totalorder %s15, 0
      %p62 = por %p60, %p61
      %p63 = scmp.ne.s32.totalorder %s49, %s50
      %p64 = scmp.eq.s32.totalorder %s16, 3
      %p65 = por %p63, %p64
      %p67 = scmp.ne.s32.totalorder %s50, %s66
      %p68 = scmp.eq.s32.totalorder %s16, 0
      %p69 = por %p67, %p68
      %p70 = scmp.le.s32.totalorder 1, %s10
      %p71 = scmp.lt.s32.totalorder %s10, 5
      %p72 = pnand %p70, %p71
      %p73 = pneg %p72
      // Predicated region
      $region9: #{tpu_custom_call.1} parent=5 // pred_check
        _
      $region10: #{tpu_custom_call.1} parent=5 // pred_check_branch
        %75 = sbr.rel (%p72) target = $region12
      $region11: #{tpu_custom_call.1} parent=5 // pred_region
        %s76 = ssub.s32 %s10, 1
      $region12: #{tpu_custom_call.1} parent=5 // pred_fallthru
        _
      %p77 = scmp.lt.s32.totalorder %s10, 4
      // Predicated region
      $region13: #{tpu_custom_call.1} parent=5 // pred_check
        %p78 = pneg %p77
      $region14: #{tpu_custom_call.1} parent=5 // pred_check_branch
        %80 = sbr.rel (%p78) target = $region16
      $region15: #{tpu_custom_call.1} parent=5 // pred_region
        // Predicated region
        $region17: #{tpu_custom_call.1} parent=15 // pred_check
          %p81 = pneg %p30
        $region18: #{tpu_custom_call.1} parent=15 // pred_check_branch
          %83 = sbr.rel (%p81) target = $region20
        $region19: #{tpu_custom_call.1} parent=15 // pred_region
          %s84 = sand.u32 %s20, 1
          %s85 = scalar_lea.sflag [#allocation3], %s84
          %s86 = sand.u32 %s20, 1
          %s87 = smul.addr %s86, 32
          %s88 = scalar_lea.vmem [#allocation2], %s87
          %s89 = smul.u32 2, %s10
          %s91 = ssub.s32 512, 512
          %92 = vsyncadd %s85, %s91
          %s93 = smul.addr %s89, 2
          %s94 = smul.addr %s93, 128
          %s95 = scalar_lea.hbm %s0, %s94
          %s96 = sshll.u32 %s88, 4
          %s97 = int_to_ptr.vmem [resolvable:$true] %s96
          %102 = dma.hbm_to_vmem [thread:$0]  %s95, 512, %s97, %s85, 128, 128, 8
        $region20: #{tpu_custom_call.1} parent=15 // pred_fallthru
          _
      $region16: #{tpu_custom_call.1} parent=5 // pred_fallthru
        _
      %p103 = scmp.le.s32.totalorder 1, %s10
      %p104 = scmp.lt.s32.totalorder %s10, 5
      %p105 = pnand %p103, %p104
      %p106 = pneg %p105
      // Predicated region
      $region21: #{tpu_custom_call.1} parent=5 // pred_check
        _
      $region22: #{tpu_custom_call.1} parent=5 // pred_check_branch
        %108 = sbr.rel (%p105) target = $region24
      $region23: #{tpu_custom_call.1} parent=5 // pred_region
        %s109 = ssub.s32 %s10, 1
        %s110 = sand.u32 %s23, 1
        %s111 = scalar_lea.sflag [#allocation3], %s110
        %s112 = sand.u32 %s23, 1
        %s113 = smul.addr %s112, 32
        %s114 = scalar_lea.vmem [#allocation2], %s113
        // Predicated region
        $region25: #{tpu_custom_call.1} parent=23 // pred_check
          %p115 = pneg %p36
        $region26: #{tpu_custom_call.1} parent=23 // pred_check_branch
          %117 = sbr.rel (%p115) target = $region28
        $region27: #{tpu_custom_call.1} parent=23 // pred_region
          %118 = dma.done %s111, 512
        $region28: #{tpu_custom_call.1} parent=23 // pred_fallthru
          _
        %s119 = sand.u32 %s23, 1
        %s120 = scalar_lea.sflag [#allocation3], %s119
        %s121 = sand.u32 %s23, 1
        %s122 = smul.addr %s121, 32
        %s123 = scalar_lea.vmem [#allocation2], %s122
        %p124 = pneg %p36
        %p125 = pneg %p33
        %p126 = pneg %p62
        %p127 = pneg %p59
        %s128 = smul.u32 2, %s15
        %p129 = scmp.lt.s32.totalorder %s128, 7
        %s130 = scalar_select %p129, %s128, 7
        %s131 = smul.addr %s130, 2
        %s132 = smul.addr %s131, 8
        %s133 = scalar_lea.vmem %s1, %s132
        %s134 = smul.u32 2, %s15
        %s135 = smul.u32 2, %s15
        %p136 = scmp.lt.s32.totalorder %s135, 7
        %s137 = scalar_select %p136, %s135, 7
        %s138 = smul.addr %s137, 2
        %s139 = smul.addr %s138, 8
        %s140 = scalar_lea.vmem %s1, %s139
        %s141 = smul.u32 2, %s15
        %v142 = vld [vmem:[%s114 + $0x1] sm:$0xff]
        %v143 = vld [vmem:[%s114 + $0x9] sm:$0x3f]
        %v144 = vld [vmem:[%s114 + $0x11] sm:$0xff]
        %v145 = vld [vmem:[%s114 + $0x19] sm:$0x3f]
        %150 = vrot.lane.b32.xlu0 %v142, 127
        %v151 = vpop.permute.xlu0 %150
        %152 = vrot.lane.b32.xlu0 %v143, 127
        %v153 = vpop.permute.xlu0 %152
        %154 = vrot.lane.b32.xlu0 %v144, 127
        %v155 = vpop.permute.xlu0 %154
        %156 = vrot.lane.b32.xlu0 %v145, 127
        %v157 = vpop.permute.xlu0 %156
        %vm162 = vcmask 113664
        %163 = vst.msk [vmem:[%s140] sm:$0xff] %vm162, %v151
        %vm164 = vcmask 111616
        %165 = vst.msk [vmem:[%s140 + $0x8] sm:$0x3f] %vm164, %v153
        %166 = vst.msk [vmem:[%s140 + $0x10] sm:$0xff] %vm162, %v155
        %167 = vst.msk [vmem:[%s140 + $0x18] sm:$0x3f] %vm164, %v157
        %s168 = smul.u32 2, %s15
        %p169 = scmp.lt.s32.totalorder %s168, 7
        %s170 = scalar_select %p169, %s168, 7
        %s171 = smul.addr %s170, 2
        %s172 = smul.addr %s171, 8
        %s173 = scalar_lea.vmem %s1, %s172
        // Predicated region
        $region29: #{tpu_custom_call.1} parent=23 // pred_check
          %p174 = pneg %p59
        $region30: #{tpu_custom_call.1} parent=23 // pred_check_branch
          %176 = sbr.rel (%p174) target = $region32
        $region31: #{tpu_custom_call.1} parent=23 // pred_region
          %s177 = smul.u32 2, %s15
        $region32: #{tpu_custom_call.1} parent=23 // pred_fallthru
          _
      $region24: #{tpu_custom_call.1} parent=5 // pred_fallthru
        _
      %p178 = scmp.le.s32.totalorder 2, %s10
      // Predicated region
      $region33: #{tpu_custom_call.1} parent=5 // pred_check
        %p179 = pneg %p178
      $region34: #{tpu_custom_call.1} parent=5 // pred_check_branch
        %181 = sbr.rel (%p179) target = $region36
      $region35: #{tpu_custom_call.1} parent=5 // pred_region
        %s182 = ssub.s32 %s10, 2
        // Predicated region
        $region37: #{tpu_custom_call.1} parent=35 // pred_check
          %p183 = pneg %p65
        $region38: #{tpu_custom_call.1} parent=35 // pred_check_branch
          %185 = sbr.rel (%p183) target = $region40
        $region39: #{tpu_custom_call.1} parent=35 // pred_region
          %s186 = smul.u32 2, %s16
          %p187 = scmp.lt.s32.totalorder %s186, 7
          %s188 = scalar_select %p187, %s186, 7
          %s189 = smul.addr %s188, 2
          %s190 = smul.addr %s189, 8
          %s191 = scalar_lea.vmem %s1, %s190
        $region40: #{tpu_custom_call.1} parent=35 // pred_fallthru
          _
      $region36: #{tpu_custom_call.1} parent=5 // pred_fallthru
        _
    $region6: #{tpu_custom_call.1} parent=1 // loop_footer
      %s14 = sadd.s32 1, %s10
    $region7: #{tpu_custom_call.1} parent=1 // loop_footer_branch
      %9 = sbr.rel target = $region3
    $region8: #{tpu_custom_call.1} parent=1 // loop_exit
      _
    %192 = vsyncpa [#allocation3], 1
    %s193 = scalar_lea.sflag [#allocation3], 1
    %194 = vsyncpa %s193, 1

</llo_original>
